<compile_context>
chip_gen: v5e
topology: v5e:2x2
jax: 0.10.0
libtpu: 0.0.40
codegen_flags: <defaults>
</compile_context>

<pallas_src>
import functools

import jax
import jax.numpy as jnp
from jax.experimental import pallas as pl
from jax.experimental.pallas import tpu as pltpu

# Minimum second-to-last-dim tile size by itemsize (sublane packing).
_MIN_SUBLANES = {4: 8, 2: 16, 1: 32}


def _swish_kernel(x_ref, o_ref):
    x = x_ref[...]
    # f32 compute for parity with torch's sigmoid; cast back to output dtype.
    # TODO(synk): if profiling ever shows the VALU/EUP slot binding on v7x,
    # switch to pl.reciprocal(1 + jnp.exp(-xf), approx=True) (relaxes parity).
    xf = x.astype(jnp.float32)
    o_ref[...] = (xf * jax.nn.sigmoid(xf)).astype(o_ref.dtype)


@functools.lru_cache(maxsize=None)
def _chip_config():
    """(target_block_bytes, vmem_limit_bytes_or_None, min_grid_steps)."""
    kind = ""
    try:
        kind = jax.devices()[0].device_kind.lower()
    except Exception:
        pass
    vmem_cap = None
    try:
        info = pltpu.get_tpu_info()
        vmem_cap = getattr(info, "vmem_capacity_bytes", None)
    except Exception:
        pass

    if "v7" in kind or "7x" in kind:
        # v7x: 3.2 TB/s HBM, 64 MiB physical VMEM/TC, 2 TensorCores.
        target = 6 << 20
        limit = 40 << 20
        if vmem_cap is not None:
            limit = min(limit, int(vmem_cap * 5 // 8))  # stay well under physical
        min_steps = 4  # each of the 2 TCs gets >= 2 pipelined steps
    elif "v6" in kind:
        # v6e: 4 x 4 MiB double-buffers = 16 MiB, half the 32 MiB scoped default.
        target = 4 << 20
        limit = None
        min_steps = 2
    else:
        # v5e / unknown: 16 MiB scoped default -> keep ~2 MiB blocks.
        target = 2 << 20
        limit = None
        min_steps = 2
    return target, limit, min_steps


def _pick_block_rows(rows, cols, itemsize, min_sub, target_bytes, min_steps):
    """Rows per block: ~target_bytes, multiple of min_sub, prefer >= min_steps steps."""
    if rows <= min_sub:
        return rows  # single full-extent block (allowed even if < min_sub)
    # Bandwidth-optimal block height.
    target_tr = max(min_sub, (target_bytes // (cols * itemsize)) // min_sub * min_sub)
    # Block height that yields >= min_steps grid steps (only kicks in for
    # small/medium inputs, where per-step overhead is negligible anyway).
    steps_tr = max(min_sub, (-(-rows // min_steps)) // min_sub * min_sub)
    return min(target_tr, steps_tr)


def _swish_2d(x2d, block_rows, cols, vmem_limit):
    rows = x2d.shape[0]
    n_bytes = x2d.size * x2d.dtype.itemsize
    cp_kwargs = dict(dimension_semantics=("parallel",))
    if vmem_limit is not None:
        cp_kwargs["vmem_limit_bytes"] = vmem_limit
    return pl.pallas_call(
        _swish_kernel,
        out_shape=jax.ShapeDtypeStruct(x2d.shape, x2d.dtype),
        grid=(pl.cdiv(rows, block_rows),),
        in_specs=[pl.BlockSpec((block_rows, cols), lambda i: (i, 0))],
        out_specs=pl.BlockSpec((block_rows, cols), lambda i: (i, 0)),
        compiler_params=pltpu.CompilerParams(**cp_kwargs),
        cost_estimate=pl.CostEstimate(
            flops=5 * x2d.size,
            transcendentals=x2d.size,
            bytes_accessed=2 * n_bytes),
    )(x2d)


def _swish_fused_fallback(x):
    """Single fused XLA elementwise pass (already at HBM roofline)."""
    xf = x.astype(jnp.float32)
    return (xf * jax.nn.sigmoid(xf)).astype(x.dtype)


def swish(x: jax.Array) -> jax.Array:
    """Elementwise Swish via Pallas. Works for any input shape/dtype."""
    orig_shape = x.shape
    n = x.size
    if n == 0:
        return x

    dt = jnp.dtype(x.dtype)
    itemsize = dt.itemsize
    # Guard: only 1/2/4-byte floating dtypes go through the TPU kernel.
    if itemsize not in _MIN_SUBLANES or not jnp.issubdtype(dt, jnp.floating):
        return _swish_fused_fallback(x)
    min_sub = _MIN_SUBLANES[itemsize]

    # Pick the widest 128-multiple lane width that divides n exactly
    # (preferring row counts aligned to the dtype's sublane packing). The
    # reshape of a contiguous array is free -- no pad, no slice, no extra HBM
    # traffic beyond the kernel's own read + write.
    cols = None
    for c in (1024, 512, 256, 128):
        if n % c == 0 and (n // c) % min_sub == 0:
            cols = c
            break
    if cols is None:
        for c in (1024, 512, 256, 128):
            if n % c == 0:
                cols = c
                break

    if cols is None:
        # Element count not a multiple of 128: one fused pass beats
        # pad -> kernel -> slice (which adds ~2 extra full HBM passes).
        return _swish_fused_fallback(x)

    target_bytes, vmem_limit, min_steps = _chip_config()
    rows = n // cols
    block_rows = _pick_block_rows(rows, cols, itemsize, min_sub,
                                  target_bytes, min_steps)
    out2d = _swish_2d(x.reshape(rows, cols), block_rows, cols, vmem_limit)
    return out2d.reshape(orig_shape)


if __name__ == "__main__":
    key = jax.random.PRNGKey(0)
    # Small NCHW-style input consistent with a conv-stack activation: [B, C, H, W]
    x = jax.random.normal(key, (2, 4, 16, 16), dtype=jnp.float32)

    y = swish(x)
    jax.block_until_ready(y)

    y_ref = x * jax.nn.sigmoid(x)
    assert y.shape == x.shape and y.dtype == x.dtype
    assert jnp.allclose(y, y_ref, atol=1e-6, rtol=1e-6)

    # Aligned multi-block path (exercises the grid / parallel axis).
    x2 = jax.random.normal(jax.random.PRNGKey(1), (16, 1024), dtype=jnp.float32)
    y2 = swish(x2)
    jax.block_until_ready(y2)
    assert jnp.allclose(y2, x2 * jax.nn.sigmoid(x2), atol=1e-6, rtol=1e-6)

    # Unaligned size -> fused fallback path.
    x_odd = jax.random.normal(jax.random.PRNGKey(2), (3, 5, 7), dtype=jnp.float32)
    y_odd = swish(x_odd)
    jax.block_until_ready(y_odd)
    assert jnp.allclose(y_odd, x_odd * jax.nn.sigmoid(x_odd), atol=1e-6, rtol=1e-6)

    print("KERNEL_OK")
</pallas_src>

<mosaic_0001>
module attributes {stable_mosaic.version = 11 : i64} {
  func.func @_swish_kernel(%arg0: i32, %arg1: memref<8x256xf32, #tpu.memory_space<vmem>>, %arg2: memref<8x256xf32, #tpu.memory_space<vmem>>) attributes {dimension_semantics = [#tpu.dimension_semantics<parallel>], iteration_bounds = array<i64: 1>, scalar_prefetch = 0 : i64, scratch_operands = 0 : i64, tpu.core_type = #tpu.core_type<tc>, window_params = [{transform_indices = @transform_0, window_bounds = array<i64: 8, 256>}, {transform_indices = @transform_1, window_bounds = array<i64: 8, 256>}]} {
    %c0 = arith.constant 0 : index
    %c0_0 = arith.constant 0 : index
    %0 = vector.load %arg1[%c0, %c0_0] : memref<8x256xf32, #tpu.memory_space<vmem>>, vector<8x256xf32>
    %1 = arith.negf %0 : vector<8x256xf32>
    %2 = math.exp %1 : vector<8x256xf32>
    %cst = arith.constant 1.000000e+00 : f32
    %3 = vector.broadcast %cst : f32 to vector<8x256xf32>
    %4 = arith.addf %3, %2 : vector<8x256xf32>
    %5 = arith.divf %3, %4 : vector<8x256xf32>
    %6 = arith.mulf %0, %5 : vector<8x256xf32>
    %c0_1 = arith.constant 0 : index
    %c0_2 = arith.constant 0 : index
    %7 = vector.load %arg2[%c0_1, %c0_2] : memref<8x256xf32, #tpu.memory_space<vmem>>, vector<8x256xf32>
    tpu.vector_store %arg2[%c0_1, %c0_2], %6 {strides = array<i32>} : memref<8x256xf32, #tpu.memory_space<vmem>>, vector<8x256xf32>,
    return
  }
  func.func @transform_0(%arg0: i32) -> (i32, i32) {
    %c0_i32 = arith.constant 0 : i32
    %c0_i32_0 = arith.constant 0 : i32
    return %arg0, %c0_i32 : i32, i32
  }
  func.func @transform_1(%arg0: i32) -> (i32, i32) {
    %c0_i32 = arith.constant 0 : i32
    %c0_i32_0 = arith.constant 0 : i32
    return %arg0, %c0_i32 : i32, i32
  }
}

</mosaic_0001>

<llo_original>
// kernel: tpu_custom_call.1
$region0: #{tpu_custom_call.1}
  #allocation0 [shape = 'u32[]', space=smem, size = 0x4, offset = 0x4, fixed_abs, tag = 'smem constant byte address 0x4 - core index']
  #allocation1 [shape = 'u32[72,128]{1,0:T(1,128)}', space=vmem, size = 0x9000, scoped, tag = 'internal scratch']
  %s0 = inlined_call_operand.hbm [shape: f32[8,256], index: 0, kind: input, shape index: {}]
  %s1 = inlined_call_operand.hbm [shape: f32[8,256], index: 1, kind: output, shape index: {}]
  %s2 = sld [smem:[#allocation0]]
  $region18: #{tpu_custom_call.1} parent=0
    _
  %s4 = ssub.s32 1, %s2
  %s5 = scalar_select 0, %s4, %s2
  $region1: #{tpu_custom_call.1} parent=0
    #allocation2 [shape = 'u8[8192]{0}', space=vmem, size = 0x2000, scoped, tag = 'input window, operand 0, single buffered']
    #allocation3 [shape = 's32[1]{0}', space=sflag, size = 0x4, scoped, tag = 'scoped memory for tpu_custom_call.1']
    #allocation4 [shape = 's32[1]{0}', space=sflag, size = 0x4, scoped, tag = 'scoped memory for tpu_custom_call.1']
    #allocation5 [shape = 'u8[8192]{0}', space=vmem, size = 0x2000, scoped, tag = 'output window, operand 0, single buffered']
    %6 = vsyncpa [#allocation3], 0
    %7 = vsyncpa [#allocation4], 0
    // Predicated region
    $region2: #{tpu_custom_call.1} parent=1 // pred_check
      _
    $region3: #{tpu_custom_call.1} parent=1 // pred_check_branch
      %9 = sbr.rel (0) target = $region5
    $region4: #{tpu_custom_call.1} parent=1 // pred_region
      %11 = vsyncadd [#allocation3], 0
      %s13 = sshll.u32 %s0, 4
      %s14 = int_to_ptr.hbm [resolvable:$true] %s13
      %s15 = sshll.u32 [#allocation2], 4
      %s16 = int_to_ptr.vmem [resolvable:$true] %s15
      %18 = dma.hbm_to_vmem [thread:$0]  %s14, 256, %s16, [#allocation3]
    $region5: #{tpu_custom_call.1} parent=1 // pred_fallthru
      _
    // Predicated region
    $region6: #{tpu_custom_call.1} parent=1 // pred_check
      _
    $region7: #{tpu_custom_call.1} parent=1 // pred_check_branch
      %20 = sbr.rel (0) target = $region9
    $region8: #{tpu_custom_call.1} parent=1 // pred_region
      %22 = dma.done [#allocation3], 256
    $region9: #{tpu_custom_call.1} parent=1 // pred_fallthru
      _
    %v23 = vld [vmem:[#allocation2] sm:$0xff]
    %v24 = vld [vmem:[#allocation2 + $0x8] sm:$0xff]
    %v25 = vxor.u32 %v23, 2147483648
    %v26 = vxor.u32 %v24, 2147483648
    %v27 = vmul.f32 %v25, 1.442695
    %v28 = vpow.pop %v27
    %v29 = vmul.f32 %v26, 1.442695
    %v30 = vpow.pop %v29
    %v31 = vadd.f32 %v28, 1.0
    %v32 = vadd.f32 %v30, 1.0
    %v33 = vrcp.pop %v31
    %v34 = vmul.f32 %v31, %v33
    %v35 = vsub.f32 1.0, %v34
    %v36 = vmul.f32 %v33, %v35
    %v37 = vadd.f32 %v33, %v36
    %vm38 = vweird.f32 %v31
    %vm39 = vweird.f32 %v33
    %vm40 = vmor %vm38, %vm39
    %v41 = vsel %vm40, %v33, %v37
    %v42 = vand.u32 2147483647, %v31
    %vm43 = vcmp.eq.f32.partialorder %v42, 8.507059e+37
    %v44 = vand.u32 %v31, 2147483648
    %v45 = vor.u32 1.1754944e-38, %v44
    %v46 = vsel %vm43, %v45, %v41
    %v47 = vmul.f32 1.0, %v46
    %v48 = vrcp.pop %v32
    %v49 = vmul.f32 %v32, %v48
    %v50 = vsub.f32 1.0, %v49
    %v51 = vmul.f32 %v48, %v50
    %v52 = vadd.f32 %v48, %v51
    %vm53 = vweird.f32 %v32
    %vm54 = vweird.f32 %v48
    %vm55 = vmor %vm53, %vm54
    %v56 = vsel %vm55, %v48, %v52
    %v57 = vand.u32 2147483647, %v32
    %vm58 = vcmp.eq.f32.partialorder %v57, 8.507059e+37
    %v59 = vand.u32 %v32, 2147483648
    %v60 = vor.u32 1.1754944e-38, %v59
    %v61 = vsel %vm58, %v60, %v56
    %v62 = vmul.f32 1.0, %v61
    %v63 = vmul.f32 %v23, %v47
    %v64 = vmul.f32 %v24, %v62
    %65 = vst [vmem:[#allocation5] sm:$0xff] %v63
    %66 = vst [vmem:[#allocation5 + $0x8] sm:$0xff] %v64
    // Predicated region
    $region10: #{tpu_custom_call.1} parent=1 // pred_check
      _
    $region11: #{tpu_custom_call.1} parent=1 // pred_check_branch
      %68 = sbr.rel (0) target = $region13
    $region12: #{tpu_custom_call.1} parent=1 // pred_region
      %70 = vsyncadd [#allocation4], 0
      %s72 = sshll.u32 [#allocation5], 4
      %s73 = int_to_ptr.vmem [resolvable:$true] %s72
      %s74 = sshll.u32 %s1, 4
      %s75 = int_to_ptr.hbm [resolvable:$true] %s74
      %77 = dma.vmem_to_hbm [thread:$0]  %s73, 256, %s75, [#allocation4]
    $region13: #{tpu_custom_call.1} parent=1 // pred_fallthru
      _
    // Predicated region
    $region14: #{tpu_custom_call.1} parent=1 // pred_check
      _
    $region15: #{tpu_custom_call.1} parent=1 // pred_check_branch
      %79 = sbr.rel (0) target = $region17
    $region16: #{tpu_custom_call.1} parent=1 // pred_region
      %81 = dma.done [#allocation4], 256
    $region17: #{tpu_custom_call.1} parent=1 // pred_fallthru
      _
    %82 = vsyncpa [#allocation3], 1
    %83 = vsyncpa [#allocation4], 1

</llo_original>
